<compile_context>
chip_gen: v6e
topology: v6e:2x2x1
jax: 0.10.0
libtpu: 0.0.40
codegen_flags: <defaults>
</compile_context>

<pallas_src>
import jax
import jax.numpy as jnp
from jax.experimental import pallas as pl
from jax.experimental.pallas import tpu as pltpu


def _round_up(x, m):
    return ((x + m - 1) // m) * m


def _seqnet_kernel(x_ref, a_ref, b_ref, o_ref, acc_ref):
    """One (batch-tile, K-tile) grid step.

    x_ref  : (TB, TK)       activation tile
    a_ref  : (TK, N)        fused conv+mean weight tile
    b_ref  : (1, N)  f32    bias (grid-invariant)
    o_ref  : (TB, N)        output tile (written on the last K step)
    acc_ref: (TB, N) f32    accumulator scratch (persists across K steps)
    """
    k = pl.program_id(1)

    @pl.when(k == 0)
    def _():
        acc_ref[...] = jnp.zeros_like(acc_ref)

    acc_ref[...] += jnp.dot(x_ref[...], a_ref[...],
                            preferred_element_type=jnp.float32)

    @pl.when(k == pl.num_programs(1) - 1)
    def _():
        o_ref[...] = (acc_ref[...] + b_ref[...]).astype(o_ref.dtype)


def seqnet_forward(x, weight, bias, *, w_kernel, use_bf16=False,
                   vmem_budget_bytes=40 * 1024 * 1024):
    """x: (B, seqL, inDims) [or (B, inDims) -> unsqueezed]; weight: (outDims, inDims, w); bias: (outDims,)."""
    if x.ndim < 3:
        x = x[:, None, :]                       # matches torch's unsqueeze(1)

    B, seq_l, in_dims = x.shape
    out_dims = weight.shape[0]
    assert weight.shape == (out_dims, in_dims, w_kernel)
    t_out = seq_l - w_kernel + 1
    assert t_out >= 1, "seqL must be >= conv kernel width w"

    out_dtype = x.dtype

    # ---- Precompute fused (conv + mean) weight: A[s, c, o] ----------------
    # A[s, c, o] = (1/t_out) * sum_{k : 0 <= s-k < t_out, 0 <= k < w} W[o, c, k]
    w_t = jnp.transpose(weight, (2, 1, 0)).astype(jnp.float32)   # (w, in, out)
    a_rows = []
    for s in range(seq_l):                                       # static loop
        k_lo = max(0, s - t_out + 1)
        k_hi = min(w_kernel - 1, s)
        a_rows.append(jnp.sum(w_t[k_lo:k_hi + 1], axis=0))       # (in, out)
    a = jnp.stack(a_rows, axis=0) / float(t_out)                 # (seqL, in, out)

    k_dim = seq_l * in_dims
    a = a.reshape(k_dim, out_dims)

    # ---- Lane-dense output: pad N up to a multiple of 128 -----------------
    n_pad = _round_up(out_dims, 128)
    if n_pad != out_dims:
        a = jnp.pad(a, ((0, 0), (0, n_pad - out_dims)))
    bias2d = jnp.pad(bias.astype(jnp.float32).reshape(1, out_dims),
                     ((0, 0), (0, n_pad - out_dims)))

    x_flat = x.reshape(B, k_dim)

    if use_bf16:
        in_dtype = jnp.bfloat16          # halves the dominant x HBM stream
        x_flat = x_flat.astype(in_dtype)
        a = a.astype(in_dtype)
    else:
        in_dtype = x.dtype
        a = a.astype(in_dtype)

    in_isz = jnp.dtype(in_dtype).itemsize
    out_isz = jnp.dtype(out_dtype).itemsize
    sub = 16 if in_isz <= 2 else 8       # sublane multiple (bf16 packs 16 rows)

    # ---- Tile selection from a VMEM budget --------------------------------
    # Footprint: x double-buffered, A (1 or 2 bufs), out double-buffered,
    # f32 accumulator scratch, bias.
    def _max_tb(tk, a_bufs):
        fixed = a_bufs * tk * n_pad * in_isz + 2 * n_pad * 4
        per_row = 2 * tk * in_isz + 2 * n_pad * out_isz + n_pad * 4
        return max(0, (vmem_budget_bytes - fixed) // per_row)

    tb_full = int(_max_tb(k_dim, 1))     # A single-buffered when grid-invariant
    if tb_full >= min(B, sub):
        # Full-K fits: single K step (any k_dim is legal as a full-extent dim).
        tk, k_tiles, k_total = k_dim, 1, k_dim
        tb = tb_full
    else:
        # K-reduction tiling (accumulator pattern). Pad K so every K tile is
        # fully in-bounds: OOB reads along a reduction axis would be garbage.
        tb = max(sub, min(_round_up(B, sub), 512))
        rem = vmem_budget_bytes - (2 * tb * n_pad * out_isz
                                   + tb * n_pad * 4 + 2 * n_pad * 4)
        tk = rem // ((2 * tb + 2 * n_pad) * in_isz)
        tk = max(128, (int(tk) // 128) * 128)
        tk = min(tk, _round_up(k_dim, 128))
        k_tiles = pl.cdiv(_round_up(k_dim, 128), tk)
        k_total = int(k_tiles) * tk
        if k_total != k_dim:
            # TODO(synk): pads x once in HBM; only hit when K is too large for
            # VMEM *and* ragged w.r.t. the 128-aligned K tile.
            x_flat = jnp.pad(x_flat, ((0, 0), (0, k_total - k_dim)))
            a = jnp.pad(a, ((0, k_total - k_dim), (0, 0)))

    # Batch tile: full-extent for tiny B, otherwise a multiple of `sub`.
    # Guarantee >= 2 grid steps along batch when B is large enough so both
    # v7x TensorCores get work ("parallel" axis is sharded across cores).
    if B <= sub:
        tb = B
    else:
        tb = min(tb, _round_up(B, sub))
        if B > 2 * sub:
            tb = min(tb, _round_up(pl.cdiv(B, 2), sub))
        tb = max(sub, (tb // sub) * sub)
    b_tiles = pl.cdiv(B, tb)

    grid = (b_tiles, k_tiles)

    cost = pl.CostEstimate(
        flops=2 * B * k_total * n_pad,
        transcendentals=0,
        bytes_accessed=(B * k_total * in_isz + k_total * n_pad * in_isz
                        + B * n_pad * out_isz),
    )

    def _run(single_buffer_invariant):
        def _inv(shape, imap):
            # Grid-invariant operand: one buffer is enough (halves its VMEM).
            if single_buffer_invariant:
                return pl.BlockSpec(shape, imap, pipeline_mode=pl.Buffered(1))
            return pl.BlockSpec(shape, imap)

        if k_tiles == 1:
            a_spec = _inv((tk, n_pad), lambda i, k: (0, 0))
        else:
            a_spec = pl.BlockSpec((tk, n_pad), lambda i, k: (k, 0))
        b_spec = _inv((1, n_pad), lambda i, k: (0, 0))

        return pl.pallas_call(
            _seqnet_kernel,
            out_shape=jax.ShapeDtypeStruct((B, n_pad), out_dtype),
            grid_spec=pltpu.PrefetchScalarGridSpec(
                num_scalar_prefetch=0,
                grid=grid,
                in_specs=[
                    pl.BlockSpec((tb, tk), lambda i, k: (i, k)),
                    a_spec,
                    b_spec,
                ],
                out_specs=pl.BlockSpec((tb, n_pad), lambda i, k: (i, 0)),
                scratch_shapes=[pltpu.VMEM((tb, n_pad), jnp.float32)],
            ),
            compiler_params=pltpu.CompilerParams(
                dimension_semantics=("parallel", "arbitrary"),
                vmem_limit_bytes=min(vmem_budget_bytes + (8 << 20), 96 << 20),
            ),
            cost_estimate=cost,
        )(x_flat, a, bias2d)

    try:
        out = _run(True)
    except Exception:
        # Fallback if this jax version rejects pipeline_mode / Buffered(1).
        out = _run(False)

    return out[:, :out_dims]


def seqnet_reference(x, weight, bias):
    """Pure-JAX reference matching torch semantics exactly (for verification)."""
    out_dims, in_dims, w = weight.shape
    B, T, _ = x.shape
    t_out = T - w + 1
    conv = jnp.zeros((B, out_dims, t_out), jnp.float32)
    for k in range(w):
        conv = conv + jnp.einsum('btc,oc->bot',
                                 x[:, k:k + t_out, :].astype(jnp.float32),
                                 weight[:, :, k].astype(jnp.float32))
    conv = conv + bias[None, :, None]
    return jnp.mean(conv, axis=-1)


if __name__ == "__main__":
    key = jax.random.PRNGKey(0)
    kx, kw, kb = jax.random.split(key, 3)

    # Small shapes implied by the module: batch of feature-vector sequences.
    B, seq_l, in_dims, out_dims, w = 2, 8, 32, 32, 5

    x = jax.random.normal(kx, (B, seq_l, in_dims), dtype=jnp.float32)
    fan_in = in_dims * w
    bound = 1.0 / (fan_in ** 0.5)
    weight = jax.random.uniform(kw, (out_dims, in_dims, w),
                                minval=-bound, maxval=bound, dtype=jnp.float32)
    bias = jax.random.uniform(kb, (out_dims,),
                              minval=-bound, maxval=bound, dtype=jnp.float32)

    # f32 correctness path (single batch tile, full-extent blocks).
    out = jax.block_until_ready(seqnet_forward(x, weight, bias, w_kernel=w))
    ref = seqnet_reference(x, weight, bias)
    assert out.shape == (B, out_dims), out.shape
    assert jnp.allclose(out, ref, atol=2e-5, rtol=2e-5), \
        float(jnp.max(jnp.abs(out - ref)))

    # Ragged multi-tile batch: exercises grid = cdiv(B, tb) with a padded last
    # tile (no jnp.pad of x; OOB output-row writes are dropped by Pallas).
    B2 = 37
    x2 = jax.random.normal(kx, (B2, seq_l, in_dims), dtype=jnp.float32)
    out2 = jax.block_until_ready(seqnet_forward(x2, weight, bias, w_kernel=w))
    ref2 = seqnet_reference(x2, weight, bias)
    assert out2.shape == (B2, out_dims), out2.shape
    assert jnp.allclose(out2, ref2, atol=2e-5, rtol=2e-5), \
        float(jnp.max(jnp.abs(out2 - ref2)))

    # bf16 perf path (halves x HBM traffic; f32 accumulation in-kernel).
    out_bf = jax.block_until_ready(
        seqnet_forward(x2, weight, bias, w_kernel=w, use_bf16=True))
    assert out_bf.shape == (B2, out_dims), out_bf.shape
    assert jnp.allclose(out_bf, ref2, atol=1e-1, rtol=5e-2), \
        float(jnp.max(jnp.abs(out_bf - ref2)))

    print("KERNEL_OK")
</pallas_src>

<mosaic_0001>
module attributes {stable_mosaic.version = 11 : i64} {
  func.func @_seqnet_kernel(%arg0: i32, %arg1: i32, %arg2: memref<2x256xf32, #tpu.memory_space<vmem>>, %arg3: memref<256x128xf32, #tpu.memory_space<vmem>>, %arg4: memref<1x128xf32, #tpu.memory_space<vmem>>, %arg5: memref<2x128xf32, #tpu.memory_space<vmem>>, %arg6: memref<2x128xf32, #tpu.memory_space<vmem>>) attributes {dimension_semantics = [#tpu.dimension_semantics<parallel>, #tpu.dimension_semantics<arbitrary>], iteration_bounds = array<i64: 1, 1>, scalar_prefetch = 0 : i64, scratch_operands = 1 : i64, tpu.core_type = #tpu.core_type<tc>, window_params = [{transform_indices = @transform_0, window_bounds = array<i64: 2, 256>}, {pipeline_mode = #tpu.pipeline_mode<synchronous>, transform_indices = @transform_1, window_bounds = array<i64: 256, 128>}, {pipeline_mode = #tpu.pipeline_mode<synchronous>, transform_indices = @transform_2, window_bounds = array<i64: 1, 128>}, {transform_indices = @transform_3, window_bounds = array<i64: 2, 128>}]} {
    %c0_i32 = arith.constant 0 : i32
    %0 = arith.cmpi eq, %arg1, %c0_i32 : i32
    %1 = arith.extui %0 : i1 to i32
    %c0_i32_0 = arith.constant 0 : i32
    %2 = arith.cmpi ne, %1, %c0_i32_0 : i32
    scf.if %2 {
      %cst_10 = arith.constant 0.000000e+00 : f32
      %12 = vector.broadcast %cst_10 : f32 to vector<2x128xf32>
      %c0_11 = arith.constant 0 : index
      %c0_12 = arith.constant 0 : index
      %13 = vector.load %arg6[%c0_11, %c0_12] : memref<2x128xf32, #tpu.memory_space<vmem>>, vector<2x128xf32>
      tpu.vector_store %arg6[%c0_11, %c0_12], %12 {strides = array<i32>} : memref<2x128xf32, #tpu.memory_space<vmem>>, vector<2x128xf32>,
    } else {
    }
    %c0 = arith.constant 0 : index
    %c0_1 = arith.constant 0 : index
    %3 = vector.load %arg6[%c0, %c0_1] : memref<2x128xf32, #tpu.memory_space<vmem>>, vector<2x128xf32>
    %c0_2 = arith.constant 0 : index
    %c0_3 = arith.constant 0 : index
    %4 = vector.load %arg2[%c0_2, %c0_3] : memref<2x256xf32, #tpu.memory_space<vmem>>, vector<2x256xf32>
    %c0_4 = arith.constant 0 : index
    %c0_5 = arith.constant 0 : index
    %5 = vector.load %arg3[%c0_4, %c0_5] : memref<256x128xf32, #tpu.memory_space<vmem>>, vector<256x128xf32>
    %cst = arith.constant dense<0.000000e+00> : vector<2x128xf32>
    %6 = tpu.matmul %4, %5, %cst {dimension_numbers = #tpu.dot_dimension_numbers<[1], [0], [0], [1], [0, 0, 1, 1], [], []>} : vector<2x256xf32>, vector<256x128xf32>, vector<2x128xf32> -> vector<2x128xf32>
    %7 = arith.addf %3, %6 : vector<2x128xf32>
    %c0_6 = arith.constant 0 : index
    %c0_7 = arith.constant 0 : index
    %8 = vector.load %arg6[%c0_6, %c0_7] : memref<2x128xf32, #tpu.memory_space<vmem>>, vector<2x128xf32>
    tpu.vector_store %arg6[%c0_6, %c0_7], %7 {strides = array<i32>} : memref<2x128xf32, #tpu.memory_space<vmem>>, vector<2x128xf32>,
    %c0_i32_8 = arith.constant 0 : i32
    %9 = arith.cmpi eq, %arg1, %c0_i32_8 : i32
    %10 = arith.extui %9 : i1 to i32
    %c0_i32_9 = arith.constant 0 : i32
    %11 = arith.cmpi ne, %10, %c0_i32_9 : i32
    scf.if %11 {
      %c0_10 = arith.constant 0 : index
      %c0_11 = arith.constant 0 : index
      %12 = vector.load %arg6[%c0_10, %c0_11] : memref<2x128xf32, #tpu.memory_space<vmem>>, vector<2x128xf32>
      %c0_12 = arith.constant 0 : index
      %c0_13 = arith.constant 0 : index
      %13 = vector.load %arg4[%c0_12, %c0_13] : memref<1x128xf32, #tpu.memory_space<vmem>>, vector<1x128xf32>
      %14 = vector.broadcast %13 : vector<1x128xf32> to vector<2x128xf32>
      %15 = arith.addf %12, %14 : vector<2x128xf32>
      %c0_14 = arith.constant 0 : index
      %c0_15 = arith.constant 0 : index
      %16 = vector.load %arg5[%c0_14, %c0_15] : memref<2x128xf32, #tpu.memory_space<vmem>>, vector<2x128xf32>
      tpu.vector_store %arg5[%c0_14, %c0_15], %15 {strides = array<i32>} : memref<2x128xf32, #tpu.memory_space<vmem>>, vector<2x128xf32>,
    } else {
    }
    return
  }
  func.func @transform_0(%arg0: i32, %arg1: i32) -> (i32, i32) {
    %c0_i32 = arith.constant 0 : i32
    return %arg0, %arg1 : i32, i32
  }
  func.func @transform_1(%arg0: i32, %arg1: i32) -> (i32, i32) {
    %c0_i32 = arith.constant 0 : i32
    %c0_i32_0 = arith.constant 0 : i32
    %c0_i32_1 = arith.constant 0 : i32
    return %c0_i32, %c0_i32_0 : i32, i32
  }
  func.func @transform_2(%arg0: i32, %arg1: i32) -> (i32, i32) {
    %c0_i32 = arith.constant 0 : i32
    %c0_i32_0 = arith.constant 0 : i32
    %c0_i32_1 = arith.constant 0 : i32
    return %c0_i32, %c0_i32_0 : i32, i32
  }
  func.func @transform_3(%arg0: i32, %arg1: i32) -> (i32, i32) {
    %c0_i32 = arith.constant 0 : i32
    %c0_i32_0 = arith.constant 0 : i32
    return %arg0, %c0_i32 : i32, i32
  }
}

module attributes {stable_mosaic.version = 11 : i64} {
  func.func @_seqnet_kernel(%arg0: i32, %arg1: i32, %arg2: memref<2x256xf32, #tpu.memory_space<vmem>>, %arg3: memref<256x128xf32, #tpu.memory_space<vmem>>, %arg4: memref<1x128xf32, #tpu.memory_space<vmem>>, %arg5: memref<2x128xf32, #tpu.memory_space<vmem>>, %arg6: memref<2x128xf32, #tpu.memory_space<vmem>>) attributes {dimension_semantics = [#tpu.dimension_semantics<parallel>, #tpu.dimension_semantics<arbitrary>], iteration_bounds = array<i64: 1, 1>, scalar_prefetch = 0 : i64, scratch_operands = 1 : i64, tpu.core_type = #tpu.core_type<tc>, window_params = [{transform_indices = @transform_0, window_bounds = array<i64: 2, 256>}, {pipeline_mode = #tpu.pipeline_mode<synchronous>, transform_indices = @transform_1, window_bounds = array<i64: 256, 128>}, {pipeline_mode = #tpu.pipeline_mode<synchronous>, transform_indices = @transform_2, window_bounds = array<i64: 1, 128>}, {transform_indices = @transform_3, window_bounds = array<i64: 2, 128>}]} {
    %c0_i32 = arith.constant 0 : i32
    %0 = arith.cmpi eq, %arg1, %c0_i32 : i32
    %1 = arith.extui %0 : i1 to i32
    %c0_i32_0 = arith.constant 0 : i32
    %2 = arith.cmpi ne, %1, %c0_i32_0 : i32
    scf.if %2 {
      %cst_10 = arith.constant 0.000000e+00 : f32
      %12 = vector.broadcast %cst_10 : f32 to vector<2x128xf32>
      %c0_11 = arith.constant 0 : index
      %c0_12 = arith.constant 0 : index
      %13 = vector.load %arg6[%c0_11, %c0_12] : memref<2x128xf32, #tpu.memory_space<vmem>>, vector<2x128xf32>
      tpu.vector_store %arg6[%c0_11, %c0_12], %12 {strides = array<i32>} : memref<2x128xf32, #tpu.memory_space<vmem>>, vector<2x128xf32>,
    } else {
    }
    %c0 = arith.constant 0 : index
    %c0_1 = arith.constant 0 : index
    %3 = vector.load %arg6[%c0, %c0_1] : memref<2x128xf32, #tpu.memory_space<vmem>>, vector<2x128xf32>
    %c0_2 = arith.constant 0 : index
    %c0_3 = arith.constant 0 : index
    %4 = vector.load %arg2[%c0_2, %c0_3] : memref<2x256xf32, #tpu.memory_space<vmem>>, vector<2x256xf32>
    %c0_4 = arith.constant 0 : index
    %c0_5 = arith.constant 0 : index
    %5 = vector.load %arg3[%c0_4, %c0_5] : memref<256x128xf32, #tpu.memory_space<vmem>>, vector<256x128xf32>
    %cst = arith.constant dense<0.000000e+00> : vector<2x128xf32>
    %6 = tpu.matmul %4, %5, %cst {dimension_numbers = #tpu.dot_dimension_numbers<[1], [0], [0], [1], [0, 0, 1, 1], [], []>} : vector<2x256xf32>, vector<256x128xf32>, vector<2x128xf32> -> vector<2x128xf32>
    %7 = arith.addf %3, %6 : vector<2x128xf32>
    %c0_6 = arith.constant 0 : index
    %c0_7 = arith.constant 0 : index
    %8 = vector.load %arg6[%c0_6, %c0_7] : memref<2x128xf32, #tpu.memory_space<vmem>>, vector<2x128xf32>
    tpu.vector_store %arg6[%c0_6, %c0_7], %7 {strides = array<i32>} : memref<2x128xf32, #tpu.memory_space<vmem>>, vector<2x128xf32>,
    %c0_i32_8 = arith.constant 0 : i32
    %9 = arith.cmpi eq, %arg1, %c0_i32_8 : i32
    %10 = arith.extui %9 : i1 to i32
    %c0_i32_9 = arith.constant 0 : i32
    %11 = arith.cmpi ne, %10, %c0_i32_9 : i32
    scf.if %11 {
      %c0_10 = arith.constant 0 : index
      %c0_11 = arith.constant 0 : index
      %12 = vector.load %arg6[%c0_10, %c0_11] : memref<2x128xf32, #tpu.memory_space<vmem>>, vector<2x128xf32>
      %c0_12 = arith.constant 0 : index
      %c0_13 = arith.constant 0 : index
      %13 = vector.load %arg4[%c0_12, %c0_13] : memref<1x128xf32, #tpu.memory_space<vmem>>, vector<1x128xf32>
      %14 = vector.broadcast %13 : vector<1x128xf32> to vector<2x128xf32>
      %15 = arith.addf %12, %14 : vector<2x128xf32>
      %c0_14 = arith.constant 0 : index
      %c0_15 = arith.constant 0 : index
      %16 = vector.load %arg5[%c0_14, %c0_15] : memref<2x128xf32, #tpu.memory_space<vmem>>, vector<2x128xf32>
      tpu.vector_store %arg5[%c0_14, %c0_15], %15 {strides = array<i32>} : memref<2x128xf32, #tpu.memory_space<vmem>>, vector<2x128xf32>,
    } else {
    }
    return
  }
  func.func @transform_0(%arg0: i32, %arg1: i32) -> (i32, i32) {
    %c0_i32 = arith.constant 0 : i32
    return %arg0, %arg1 : i32, i32
  }
  func.func @transform_1(%arg0: i32, %arg1: i32) -> (i32, i32) {
    %c0_i32 = arith.constant 0 : i32
    %c0_i32_0 = arith.constant 0 : i32
    %c0_i32_1 = arith.constant 0 : i32
    return %c0_i32, %c0_i32_0 : i32, i32
  }
  func.func @transform_2(%arg0: i32, %arg1: i32) -> (i32, i32) {
    %c0_i32 = arith.constant 0 : i32
    %c0_i32_0 = arith.constant 0 : i32
    %c0_i32_1 = arith.constant 0 : i32
    return %c0_i32, %c0_i32_0 : i32, i32
  }
  func.func @transform_3(%arg0: i32, %arg1: i32) -> (i32, i32) {
    %c0_i32 = arith.constant 0 : i32
    %c0_i32_0 = arith.constant 0 : i32
    return %arg0, %c0_i32 : i32, i32
  }
}

</mosaic_0001>

<llo_original>
// kernel: tpu_custom_call.1
$region0: #{tpu_custom_call.1}
  #allocation0 [shape = 'u32[]', space=smem, size = 0x4, offset = 0x4, fixed_abs, tag = 'smem constant byte address 0x4 - core index']
  #allocation1 [shape = 'u32[144,128]{1,0:T(1,128)}', space=vmem, size = 0x12000, scoped, tag = 'internal scratch']
  #allocation2 [shape = 'f32[2,128]{1,0:T(2,128)}', space=vmem, size = 0x400, scoped, tag = 'scratch operand']
  %s0 = inlined_call_operand.hbm [shape: f32[2,256], index: 0, kind: input, shape index: {}]
  %s1 = inlined_call_operand.hbm [shape: f32[256,128], index: 1, kind: input, shape index: {}]
  %s2 = inlined_call_operand.vmem [shape: f32[1,128], index: 2, kind: input, shape index: {}]
  %s3 = inlined_call_operand.hbm [shape: f32[2,128], index: 3, kind: output, shape index: {}]
  %s4 = sld [smem:[#allocation0]]
  $region38: #{tpu_custom_call.1} parent=0
    _
  %s6 = ssub.s32 1, %s4
  %s7 = scalar_select 0, %s6, %s4
  $region1: #{tpu_custom_call.1} parent=0
    #allocation3 [shape = 'u8[2048]{0}', space=vmem, size = 0x800, scoped, tag = 'input window, operand 0, single buffered']
    #allocation4 [shape = 's32[1]{0}', space=sflag, size = 0x4, scoped, tag = 'scoped memory for tpu_custom_call.1']
    #allocation5 [shape = 's32[1]{0}', space=sflag, size = 0x4, scoped, tag = 'scoped memory for tpu_custom_call.1']
    #allocation6 [shape = 'u8[131072]{0}', space=vmem, size = 0x20000, scoped, tag = 'input window, operand 1, single buffered']
    #allocation7 [shape = 's32[1]{0}', space=sflag, size = 0x4, scoped, tag = 'scoped memory for tpu_custom_call.1']
    #allocation8 [shape = 'u8[1024]{0}', space=vmem, size = 0x400, scoped, tag = 'output window, operand 0, single buffered']
    %8 = vsyncpa [#allocation4], 0
    %9 = vsyncpa [#allocation7], 0
    %10 = vsyncpa [#allocation5], 0
    // Predicated region
    $region2: #{tpu_custom_call.1} parent=1 // pred_check
      _
    $region3: #{tpu_custom_call.1} parent=1 // pred_check_branch
      %12 = sbr.rel (0) target = $region5
    $region4: #{tpu_custom_call.1} parent=1 // pred_region
      %s14 = ssub.s32 64, 64
      %15 = vsyncadd [#allocation4], %s14
      %s17 = sshll.u32 [#allocation3], 4
      %s18 = int_to_ptr.vmem [resolvable:$true] %s17
      %20 = dma.hbm_to_vmem [thread:$0]  %s0, 64, %s18, [#allocation4]
    $region5: #{tpu_custom_call.1} parent=1 // pred_fallthru
      _
    // Predicated region
    $region6: #{tpu_custom_call.1} parent=1 // pred_check
      _
    $region7: #{tpu_custom_call.1} parent=1 // pred_check_branch
      %22 = sbr.rel (0) target = $region9
    $region8: #{tpu_custom_call.1} parent=1 // pred_region
      %s24 = ssub.s32 4096, 4096
      %25 = vsyncadd [#allocation7], %s24
      %s26 = sshll.u32 [#allocation6], 4
      %s27 = int_to_ptr.vmem [resolvable:$true] %s26
      %32 = dma.hbm_to_vmem [thread:$0]  %s1, 4096, %s27, [#allocation7], 128, 128, 8
    $region9: #{tpu_custom_call.1} parent=1 // pred_fallthru
      _
    // Predicated region
    $region10: #{tpu_custom_call.1} parent=1 // pred_check
      _
    $region11: #{tpu_custom_call.1} parent=1 // pred_check_branch
      %34 = sbr.rel (0) target = $region13
    $region12: #{tpu_custom_call.1} parent=1 // pred_region
      _
    $region13: #{tpu_custom_call.1} parent=1 // pred_fallthru
      _
    // Predicated region
    $region14: #{tpu_custom_call.1} parent=1 // pred_check
      _
    $region15: #{tpu_custom_call.1} parent=1 // pred_check_branch
      %36 = sbr.rel (0) target = $region17
    $region16: #{tpu_custom_call.1} parent=1 // pred_region
      %37 = dma.done [#allocation4], 64
    $region17: #{tpu_custom_call.1} parent=1 // pred_fallthru
      _
    // Predicated region
    $region18: #{tpu_custom_call.1} parent=1 // pred_check
      _
    $region19: #{tpu_custom_call.1} parent=1 // pred_check_branch
      %39 = sbr.rel (0) target = $region21
    $region20: #{tpu_custom_call.1} parent=1 // pred_region
      %40 = dma.done [#allocation7], 4096
    $region21: #{tpu_custom_call.1} parent=1 // pred_fallthru
      _
    %p41 = scmp.eq.s32.totalorder 0, 0
    // Predicated region
    $region22: #{tpu_custom_call.1} parent=1 // pred_check
      %p42 = pneg %p41
    $region23: #{tpu_custom_call.1} parent=1 // pred_check_branch
      %44 = sbr.rel (%p42) target = $region25
    $region24: #{tpu_custom_call.1} parent=1 // pred_region
      %45 = vst [vmem:[#allocation2] sm:$0x3] 0.0
    $region25: #{tpu_custom_call.1} parent=1 // pred_fallthru
      _
    %v46 = vld [vmem:[#allocation2] sm:$0x3]
    %v47 = vld [vmem:[#allocation3] sm:$0xf]
    %v48 = vld [vmem:[#allocation6] sm:$0xff]
    %v49 = vld [vmem:[#allocation6 + $0x8] sm:$0xff]
    %v50 = vld [vmem:[#allocation6 + $0x10] sm:$0xff]
    %v51 = vld [vmem:[#allocation6 + $0x18] sm:$0xff]
    %v52 = vld [vmem:[#allocation6 + $0x20] sm:$0xff]
    %v53 = vld [vmem:[#allocation6 + $0x28] sm:$0xff]
    %v54 = vld [vmem:[#allocation6 + $0x30] sm:$0xff]
    %v55 = vld [vmem:[#allocation6 + $0x38] sm:$0xff]
    %v56 = vld [vmem:[#allocation6 + $0x40] sm:$0xff]
    %v57 = vld [vmem:[#allocation6 + $0x48] sm:$0xff]
    %v58 = vld [vmem:[#allocation6 + $0x50] sm:$0xff]
    %v59 = vld [vmem:[#allocation6 + $0x58] sm:$0xff]
    %v60 = vld [vmem:[#allocation6 + $0x60] sm:$0xff]
    %v61 = vld [vmem:[#allocation6 + $0x68] sm:$0xff]
    %v62 = vld [vmem:[#allocation6 + $0x70] sm:$0xff]
    %v63 = vld [vmem:[#allocation6 + $0x78] sm:$0xff]
    %v64 = vld [vmem:[#allocation6 + $0x80] sm:$0xff]
    %v65 = vld [vmem:[#allocation6 + $0x88] sm:$0xff]
    %v66 = vld [vmem:[#allocation6 + $0x90] sm:$0xff]
    %v67 = vld [vmem:[#allocation6 + $0x98] sm:$0xff]
    %v68 = vld [vmem:[#allocation6 + $0xa0] sm:$0xff]
    %v69 = vld [vmem:[#allocation6 + $0xa8] sm:$0xff]
    %v70 = vld [vmem:[#allocation6 + $0xb0] sm:$0xff]
    %v71 = vld [vmem:[#allocation6 + $0xb8] sm:$0xff]
    %v72 = vld [vmem:[#allocation6 + $0xc0] sm:$0xff]
    %v73 = vld [vmem:[#allocation6 + $0xc8] sm:$0xff]
    %v74 = vld [vmem:[#allocation6 + $0xd0] sm:$0xff]
    %v75 = vld [vmem:[#allocation6 + $0xd8] sm:$0xff]
    %v76 = vld [vmem:[#allocation6 + $0xe0] sm:$0xff]
    %v77 = vld [vmem:[#allocation6 + $0xe8] sm:$0xff]
    %v78 = vld [vmem:[#allocation6 + $0xf0] sm:$0xff]
    %v79 = vld [vmem:[#allocation6 + $0xf8] sm:$0xff]
    %v82 = vunpack.c.l.s4 1983009808
    %v83 = vunpack.c.0.s8 %v82
    %v84 = vlaneseq
    %v85 = vshrl.u32 %v84, 7
    %v86 = vsub.s32 %v83, %v85
    %v87 = vrot.slane %v47, %v86
    %v88 = vcombine.high %v87, %v87
    %91 = vmatprep.subr.mxu0 0.0
    %92 = vmatpush1.msra.mxu0 %v63
    %93 = vmatprep.subr.mxu0 0.0
    %94 = vmatpush1.msra.mxu0 %v62
    %95 = vmatprep.subr.mxu0 0.0
    %96 = vmatpush1.msra.mxu0 %v61
    %97 = vmatprep.subr.mxu0 0.0
    %98 = vmatpush1.msra.mxu0 %v60
    %99 = vmatprep.subr.mxu0 0.0
    %100 = vmatpush1.msra.mxu0 %v59
    %101 = vmatprep.subr.mxu0 0.0
    %102 = vmatpush1.msra.mxu0 %v58
    %103 = vmatprep.subr.mxu0 0.0
    %104 = vmatpush1.msra.mxu0 %v57
    %105 = vmatprep.subr.mxu0 0.0
    %106 = vmatpush1.msra.mxu0 %v56
    %107 = vmatprep.subr.mxu0 0.0
    %108 = vmatpush1.msra.mxu0 %v55
    %109 = vmatprep.subr.mxu0 0.0
    %110 = vmatpush1.msra.mxu0 %v54
    %111 = vmatprep.subr.mxu0 0.0
    %112 = vmatpush1.msra.mxu0 %v53
    %113 = vmatprep.subr.mxu0 0.0
    %114 = vmatpush1.msra.mxu0 %v52
    %115 = vmatprep.subr.mxu0 0.0
    %116 = vmatpush1.msra.mxu0 %v51
    %117 = vmatprep.subr.mxu0 0.0
    %118 = vmatpush1.msra.mxu0 %v50
    %119 = vmatprep.subr.mxu0 0.0
    %120 = vmatpush1.msra.mxu0 %v49
    %121 = vmatprep.subr.mxu0 0.0
    %122 = vmatpush1.msra.mxu0 %v48
    %123 = vmatprep.subr.mxu0 0.0
    %124 = vmatpush2.msra.mxu0 %v79
    %125 = vmatprep.subr.mxu0 0.0
    %126 = vmatpush2.msra.mxu0 %v78
    %127 = vmatprep.subr.mxu0 0.0
    %128 = vmatpush2.msra.mxu0 %v77
    %129 = vmatprep.subr.mxu0 0.0
    %130 = vmatpush2.msra.mxu0 %v76
    %131 = vmatprep.subr.mxu0 0.0
    %132 = vmatpush2.msra.mxu0 %v75
    %133 = vmatprep.subr.mxu0 0.0
    %134 = vmatpush2.msra.mxu0 %v74
    %135 = vmatprep.subr.mxu0 0.0
    %136 = vmatpush2.msra.mxu0 %v73
    %137 = vmatprep.subr.mxu0 0.0
    %138 = vmatpush2.msra.mxu0 %v72
    %139 = vmatprep.subr.mxu0 0.0
    %140 = vmatpush2.msra.mxu0 %v71
    %141 = vmatprep.subr.mxu0 0.0
    %142 = vmatpush2.msra.mxu0 %v70
    %143 = vmatprep.subr.mxu0 0.0
    %144 = vmatpush2.msra.mxu0 %v69
    %145 = vmatprep.subr.mxu0 0.0
    %146 = vmatpush2.msra.mxu0 %v68
    %147 = vmatprep.subr.mxu0 0.0
    %148 = vmatpush2.msra.mxu0 %v67
    %149 = vmatprep.subr.mxu0 0.0
    %150 = vmatpush2.msra.mxu0 %v66
    %151 = vmatprep.subr.mxu0 0.0
    %152 = vmatpush2.msra.mxu0 %v65
    %153 = vmatprep.subr.mxu0 0.0
    %154 = vmatpush2.msra.mxu0 %v64
    %155 = vmatprep.mubr.f32.mxu0 %v88
    %156 = vmatmul.mubr.f32.gmra.mxu0 %v87
    %v157 = vpop.f32.mrf.mxu0
    %v158 = vadd.f32 0.0, %v157
    %v159 = vpop.f32.mrf.mxu0
    %160 = vdwg.mxu0
    %v161 = vadd.f32 %v46, %v158
    %162 = vst [vmem:[#allocation2] sm:$0x3] %v161
    // Predicated region
    $region26: #{tpu_custom_call.1} parent=1 // pred_check
      %p163 = pneg %p41
    $region27: #{tpu_custom_call.1} parent=1 // pred_check_branch
      %165 = sbr.rel (%p163) target = $region29
    $region28: #{tpu_custom_call.1} parent=1 // pred_region
      %v166 = vld [vmem:[#allocation2] sm:$0x3]
      %v167 = vld [vmem:[%s2] sm:$0x1]
      %v169 = vlaneseq
      %v170 = vshrl.u32 %v169, 7
      %v171 = vsub.s32 0, %v170
      %v172 = vrot.slane %v167, %v171
      %v174 = vadd.f32 %v166, %v172
      %175 = vst [vmem:[#allocation8] sm:$0x3] %v174
    $region29: #{tpu_custom_call.1} parent=1 // pred_fallthru
      _
    // Predicated region
    $region30: #{tpu_custom_call.1} parent=1 // pred_check
      _
    $region31: #{tpu_custom_call.1} parent=1 // pred_check_branch
      %177 = sbr.rel (0) target = $region33
    $region32: #{tpu_custom_call.1} parent=1 // pred_region
      %s179 = ssub.s32 32, 32
      %180 = vsyncadd [#allocation5], %s179
      %s182 = sshll.u32 [#allocation8], 4
      %s183 = int_to_ptr.vmem [resolvable:$true] %s182
      %185 = dma.vmem_to_hbm [thread:$0]  %s183, 32, %s3, [#allocation5]
    $region33: #{tpu_custom_call.1} parent=1 // pred_fallthru
      _
    // Predicated region
    $region34: #{tpu_custom_call.1} parent=1 // pred_check
      _
    $region35: #{tpu_custom_call.1} parent=1 // pred_check_branch
      %187 = sbr.rel (0) target = $region37
    $region36: #{tpu_custom_call.1} parent=1 // pred_region
      %188 = dma.done [#allocation5], 32
    $region37: #{tpu_custom_call.1} parent=1 // pred_fallthru
      _
    %189 = vsyncpa [#allocation4], 1
    %190 = vsyncpa [#allocation7], 1
    %191 = vsyncpa [#allocation5], 1

// kernel: tpu_custom_call.1
$region0: #{tpu_custom_call.1}
  #allocation0 [shape = 'u32[]', space=smem, size = 0x4, offset = 0x4, fixed_abs, tag = 'smem constant byte address 0x4 - core index']
  #allocation1 [shape = 'u32[144,128]{1,0:T(1,128)}', space=vmem, size = 0x12000, scoped, tag = 'internal scratch']
  #allocation2 [shape = 'f32[2,128]{1,0:T(2,128)}', space=vmem, size = 0x400, scoped, tag = 'scratch operand']
  %s0 = inlined_call_operand.hbm [shape: f32[2,256], index: 0, kind: input, shape index: {}]
  %s1 = inlined_call_operand.hbm [shape: f32[256,128], index: 1, kind: input, shape index: {}]
  %s2 = inlined_call_operand.vmem [shape: f32[1,128], index: 2, kind: input, shape index: {}]
  %s3 = inlined_call_operand.hbm [shape: f32[2,128], index: 3, kind: output, shape index: {}]
  %s4 = sld [smem:[#allocation0]]
  $region38: #{tpu_custom_call.1} parent=0
    _
  %s6 = ssub.s32 1, %s4
  %s7 = scalar_select 0, %s6, %s4
  $region1: #{tpu_custom_call.1} parent=0
    #allocation3 [shape = 'u8[2048]{0}', space=vmem, size = 0x800, scoped, tag = 'input window, operand 0, single buffered']
    #allocation4 [shape = 's32[1]{0}', space=sflag, size = 0x4, scoped, tag = 'scoped memory for tpu_custom_call.1']
    #allocation5 [shape = 's32[1]{0}', space=sflag, size = 0x4, scoped, tag = 'scoped memory for tpu_custom_call.1']
    #allocation6 [shape = 'u8[131072]{0}', space=vmem, size = 0x20000, scoped, tag = 'input window, operand 1, single buffered']
    #allocation7 [shape = 's32[1]{0}', space=sflag, size = 0x4, scoped, tag = 'scoped memory for tpu_custom_call.1']
    #allocation8 [shape = 'u8[1024]{0}', space=vmem, size = 0x400, scoped, tag = 'output window, operand 0, single buffered']
    %8 = vsyncpa [#allocation4], 0
    %9 = vsyncpa [#allocation7], 0
    %10 = vsyncpa [#allocation5], 0
    // Predicated region
    $region2: #{tpu_custom_call.1} parent=1 // pred_check
      _
    $region3: #{tpu_custom_call.1} parent=1 // pred_check_branch
      %12 = sbr.rel (0) target = $region5
    $region4: #{tpu_custom_call.1} parent=1 // pred_region
      %s14 = ssub.s32 64, 64
      %15 = vsyncadd [#allocation4], %s14
      %s17 = sshll.u32 [#allocation3], 4
      %s18 = int_to_ptr.vmem [resolvable:$true] %s17
      %20 = dma.hbm_to_vmem [thread:$0]  %s0, 64, %s18, [#allocation4]
    $region5: #{tpu_custom_call.1} parent=1 // pred_fallthru
      _
    // Predicated region
    $region6: #{tpu_custom_call.1} parent=1 // pred_check
      _
    $region7: #{tpu_custom_call.1} parent=1 // pred_check_branch
      %22 = sbr.rel (0) target = $region9
    $region8: #{tpu_custom_call.1} parent=1 // pred_region
      %s24 = ssub.s32 4096, 4096
      %25 = vsyncadd [#allocation7], %s24
      %s26 = sshll.u32 [#allocation6], 4
      %s27 = int_to_ptr.vmem [resolvable:$true] %s26
      %32 = dma.hbm_to_vmem [thread:$0]  %s1, 4096, %s27, [#allocation7], 128, 128, 8
    $region9: #{tpu_custom_call.1} parent=1 // pred_fallthru
      _
    // Predicated region
    $region10: #{tpu_custom_call.1} parent=1 // pred_check
      _
    $region11: #{tpu_custom_call.1} parent=1 // pred_check_branch
      %34 = sbr.rel (0) target = $region13
    $region12: #{tpu_custom_call.1} parent=1 // pred_region
      _
    $region13: #{tpu_custom_call.1} parent=1 // pred_fallthru
      _
    // Predicated region
    $region14: #{tpu_custom_call.1} parent=1 // pred_check
      _
    $region15: #{tpu_custom_call.1} parent=1 // pred_check_branch
      %36 = sbr.rel (0) target = $region17
    $region16: #{tpu_custom_call.1} parent=1 // pred_region
      %37 = dma.done [#allocation4], 64
    $region17: #{tpu_custom_call.1} parent=1 // pred_fallthru
      _
    // Predicated region
    $region18: #{tpu_custom_call.1} parent=1 // pred_check
      _
    $region19: #{tpu_custom_call.1} parent=1 // pred_check_branch
      %39 = sbr.rel (0) target = $region21
    $region20: #{tpu_custom_call.1} parent=1 // pred_region
      %40 = dma.done [#allocation7], 4096
    $region21: #{tpu_custom_call.1} parent=1 // pred_fallthru
      _
    %p41 = scmp.eq.s32.totalorder 0, 0
    // Predicated region
    $region22: #{tpu_custom_call.1} parent=1 // pred_check
      %p42 = pneg %p41
    $region23: #{tpu_custom_call.1} parent=1 // pred_check_branch
      %44 = sbr.rel (%p42) target = $region25
    $region24: #{tpu_custom_call.1} parent=1 // pred_region
      %45 = vst [vmem:[#allocation2] sm:$0x3] 0.0
    $region25: #{tpu_custom_call.1} parent=1 // pred_fallthru
      _
    %v46 = vld [vmem:[#allocation2] sm:$0x3]
    %v47 = vld [vmem:[#allocation3] sm:$0xf]
    %v48 = vld [vmem:[#allocation6] sm:$0xff]
    %v49 = vld [vmem:[#allocation6 + $0x8] sm:$0xff]
    %v50 = vld [vmem:[#allocation6 + $0x10] sm:$0xff]
    %v51 = vld [vmem:[#allocation6 + $0x18] sm:$0xff]
    %v52 = vld [vmem:[#allocation6 + $0x20] sm:$0xff]
    %v53 = vld [vmem:[#allocation6 + $0x28] sm:$0xff]
    %v54 = vld [vmem:[#allocation6 + $0x30] sm:$0xff]
    %v55 = vld [vmem:[#allocation6 + $0x38] sm:$0xff]
    %v56 = vld [vmem:[#allocation6 + $0x40] sm:$0xff]
    %v57 = vld [vmem:[#allocation6 + $0x48] sm:$0xff]
    %v58 = vld [vmem:[#allocation6 + $0x50] sm:$0xff]
    %v59 = vld [vmem:[#allocation6 + $0x58] sm:$0xff]
    %v60 = vld [vmem:[#allocation6 + $0x60] sm:$0xff]
    %v61 = vld [vmem:[#allocation6 + $0x68] sm:$0xff]
    %v62 = vld [vmem:[#allocation6 + $0x70] sm:$0xff]
    %v63 = vld [vmem:[#allocation6 + $0x78] sm:$0xff]
    %v64 = vld [vmem:[#allocation6 + $0x80] sm:$0xff]
    %v65 = vld [vmem:[#allocation6 + $0x88] sm:$0xff]
    %v66 = vld [vmem:[#allocation6 + $0x90] sm:$0xff]
    %v67 = vld [vmem:[#allocation6 + $0x98] sm:$0xff]
    %v68 = vld [vmem:[#allocation6 + $0xa0] sm:$0xff]
    %v69 = vld [vmem:[#allocation6 + $0xa8] sm:$0xff]
    %v70 = vld [vmem:[#allocation6 + $0xb0] sm:$0xff]
    %v71 = vld [vmem:[#allocation6 + $0xb8] sm:$0xff]
    %v72 = vld [vmem:[#allocation6 + $0xc0] sm:$0xff]
    %v73 = vld [vmem:[#allocation6 + $0xc8] sm:$0xff]
    %v74 = vld [vmem:[#allocation6 + $0xd0] sm:$0xff]
    %v75 = vld [vmem:[#allocation6 + $0xd8] sm:$0xff]
    %v76 = vld [vmem:[#allocation6 + $0xe0] sm:$0xff]
    %v77 = vld [vmem:[#allocation6 + $0xe8] sm:$0xff]
    %v78 = vld [vmem:[#allocation6 + $0xf0] sm:$0xff]
    %v79 = vld [vmem:[#allocation6 + $0xf8] sm:$0xff]
    %v82 = vunpack.c.l.s4 1983009808
    %v83 = vunpack.c.0.s8 %v82
    %v84 = vlaneseq
    %v85 = vshrl.u32 %v84, 7
    %v86 = vsub.s32 %v83, %v85
    %v87 = vrot.slane %v47, %v86
    %v88 = vcombine.high %v87, %v87
    %91 = vmatprep.subr.mxu0 0.0
    %92 = vmatpush1.msra.mxu0 %v63
    %93 = vmatprep.subr.mxu0 0.0
    %94 = vmatpush1.msra.mxu0 %v62
    %95 = vmatprep.subr.mxu0 0.0
    %96 = vmatpush1.msra.mxu0 %v61
    %97 = vmatprep.subr.mxu0 0.0
    %98 = vmatpush1.msra.mxu0 %v60
    %99 = vmatprep.subr.mxu0 0.0
    %100 = vmatpush1.msra.mxu0 %v59
    %101 = vmatprep.subr.mxu0 0.0
    %102 = vmatpush1.msra.mxu0 %v58
    %103 = vmatprep.subr.mxu0 0.0
    %104 = vmatpush1.msra.mxu0 %v57
    %105 = vmatprep.subr.mxu0 0.0
    %106 = vmatpush1.msra.mxu0 %v56
    %107 = vmatprep.subr.mxu0 0.0
    %108 = vmatpush1.msra.mxu0 %v55
    %109 = vmatprep.subr.mxu0 0.0
    %110 = vmatpush1.msra.mxu0 %v54
    %111 = vmatprep.subr.mxu0 0.0
    %112 = vmatpush1.msra.mxu0 %v53
    %113 = vmatprep.subr.mxu0 0.0
    %114 = vmatpush1.msra.mxu0 %v52
    %115 = vmatprep.subr.mxu0 0.0
    %116 = vmatpush1.msra.mxu0 %v51
    %117 = vmatprep.subr.mxu0 0.0
    %118 = vmatpush1.msra.mxu0 %v50
    %119 = vmatprep.subr.mxu0 0.0
    %120 = vmatpush1.msra.mxu0 %v49
    %121 = vmatprep.subr.mxu0 0.0
    %122 = vmatpush1.msra.mxu0 %v48
    %123 = vmatprep.subr.mxu0 0.0
    %124 = vmatpush2.msra.mxu0 %v79
    %125 = vmatprep.subr.mxu0 0.0
    %126 = vmatpush2.msra.mxu0 %v78
    %127 = vmatprep.subr.mxu0 0.0
    %128 = vmatpush2.msra.mxu0 %v77
    %129 = vmatprep.subr.mxu0 0.0
    %130 = vmatpush2.msra.mxu0 %v76
    %131 = vmatprep.subr.mxu0 0.0
    %132 = vmatpush2.msra.mxu0 %v75
    %133 = vmatprep.subr.mxu0 0.0
    %134 = vmatpush2.msra.mxu0 %v74
    %135 = vmatprep.subr.mxu0 0.0
    %136 = vmatpush2.msra.mxu0 %v73
    %137 = vmatprep.subr.mxu0 0.0
    %138 = vmatpush2.msra.mxu0 %v72
    %139 = vmatprep.subr.mxu0 0.0
    %140 = vmatpush2.msra.mxu0 %v71
    %141 = vmatprep.subr.mxu0 0.0
    %142 = vmatpush2.msra.mxu0 %v70
    %143 = vmatprep.subr.mxu0 0.0
    %144 = vmatpush2.msra.mxu0 %v69
    %145 = vmatprep.subr.mxu0 0.0
    %146 = vmatpush2.msra.mxu0 %v68
    %147 = vmatprep.subr.mxu0 0.0
    %148 = vmatpush2.msra.mxu0 %v67
    %149 = vmatprep.subr.mxu0 0.0
    %150 = vmatpush2.msra.mxu0 %v66
    %151 = vmatprep.subr.mxu0 0.0
    %152 = vmatpush2.msra.mxu0 %v65
    %153 = vmatprep.subr.mxu0 0.0
    %154 = vmatpush2.msra.mxu0 %v64
    %155 = vmatprep.mubr.f32.mxu0 %v88
    %156 = vmatmul.mubr.f32.gmra.mxu0 %v87
    %v157 = vpop.f32.mrf.mxu0
    %v158 = vadd.f32 0.0, %v157
    %v159 = vpop.f32.mrf.mxu0
    %160 = vdwg.mxu0
    %v161 = vadd.f32 %v46, %v158
    %162 = vst [vmem:[#allocation2] sm:$0x3] %v161
    // Predicated region
    $region26: #{tpu_custom_call.1} parent=1 // pred_check
      %p163 = pneg %p41
    $region27: #{tpu_custom_call.1} parent=1 // pred_check_branch
      %165 = sbr.rel (%p163) target = $region29
    $region28: #{tpu_custom_call.1} parent=1 // pred_region
      %v166 = vld [vmem:[#allocation2] sm:$0x3]
      %v167 = vld [vmem:[%s2] sm:$0x1]
      %v169 = vlaneseq
      %v170 = vshrl.u32 %v169, 7
      %v171 = vsub.s32 0, %v170
      %v172 = vrot.slane %v167, %v171
      %v174 = vadd.f32 %v166, %v172
      %175 = vst [vmem:[#allocation8] sm:$0x3] %v174
    $region29: #{tpu_custom_call.1} parent=1 // pred_fallthru
      _
    // Predicated region
    $region30: #{tpu_custom_call.1} parent=1 // pred_check
      _
    $region31: #{tpu_custom_call.1} parent=1 // pred_check_branch
      %177 = sbr.rel (0) target = $region33
    $region32: #{tpu_custom_call.1} parent=1 // pred_region
      %s179 = ssub.s32 32, 32
      %180 = vsyncadd [#allocation5], %s179
      %s182 = sshll.u32 [#allocation8], 4
      %s183 = int_to_ptr.vmem [resolvable:$true] %s182
      %185 = dma.vmem_to_hbm [thread:$0]  %s183, 32, %s3, [#allocation5]
    $region33: #{tpu_custom_call.1} parent=1 // pred_fallthru
      _
    // Predicated region
    $region34: #{tpu_custom_call.1} parent=1 // pred_check
      _
    $region35: #{tpu_custom_call.1} parent=1 // pred_check_branch
      %187 = sbr.rel (0) target = $region37
    $region36: #{tpu_custom_call.1} parent=1 // pred_region
      %188 = dma.done [#allocation5], 32
    $region37: #{tpu_custom_call.1} parent=1 // pred_fallthru
      _
    %189 = vsyncpa [#allocation4], 1
    %190 = vsyncpa [#allocation7], 1
    %191 = vsyncpa [#allocation5], 1

</llo_original>
